<compile_context>
chip_gen: v5e
topology: v5e:2x2
jax: 0.10.0
libtpu: 0.0.40
codegen_flags: <defaults>
</compile_context>

<pallas_src>
import functools
import math

import jax
import jax.numpy as jnp
from jax.experimental import pallas as pl
from jax.experimental.pallas import tpu as pltpu

_NEG = -1.0e30  # finite "minus infinity" written into padded logit columns


def _round_up(v, m):
    return ((v + m - 1) // m) * m


def _lcm(a, b):
    return a * b // math.gcd(a, b)


def _class_dims(num_classes, num_subclusters):
    """(cs_pad, tn, c_pad).

    cs_pad is a multiple of 128 (lane), of num_subclusters (so padding forms whole
    classes) and of the class tile tn.  Tile first, pad second.
    """
    CS = num_classes * num_subclusters
    lane_unit = _lcm(128, num_subclusters)
    cs_min = _round_up(CS, lane_unit)
    if cs_min <= 1024:
        tn = cs_min                      # single, fully-resident class tile
    else:
        tn = _round_up(512, lane_unit)   # ~512-wide MXU-friendly class tile
    cs_pad = _round_up(CS, tn)
    return cs_pad, tn, cs_pad // num_subclusters


def _batch_dims(B, f_pad):
    """Batch tile: one tile (W^T streamed once) while the resident x block is small.

    v7x note: a single i tile means the 'parallel' axis cannot be sharded across the
    two TensorCores; on v5e/v6e (single TC) one tile is strictly best.
    """
    tm = _round_up(B, 8) if B <= 512 else 256
    cap = max(8, ((8 * 1024 * 1024) // (f_pad * 2)) // 8 * 8)   # keep x block <= ~8 MiB
    tm = min(tm, cap)
    return tm, _round_up(B, tm)


def _make_cosine_kernel(tm, tn, n_valid_cols, has_col_pad):
    """Single-K-step cosine matmul (normalization hoisted) + fused old-s LSE stats.

    Grid is (B/tm, CS/tn).  x, 1/||x|| blocks have constant index over j so they stay
    resident; per-row max / sum-exp of s_old*cos are merged online into resident
    (tm, 1) outputs across the class tiles.
    """

    def _merge(rmax_ref, rsum_ref, sl):
        m_prev = rmax_ref[...]
        m_new = jnp.maximum(m_prev, jnp.max(sl, axis=1, keepdims=True))
        rsum_ref[...] = (rsum_ref[...] * jnp.exp(m_prev - m_new)
                         + jnp.sum(jnp.exp(sl - m_new), axis=1, keepdims=True))
        rmax_ref[...] = m_new

    def kernel(s_ref, x_ref, wt_ref, xinv_ref, winv_ref,
               logits_ref, rmax_ref, rsum_ref):
        j = pl.program_id(1)
        nj = pl.num_programs(1)

        # cosine = (x @ W^T) scaled by the outer product of precomputed inverse norms
        cos = (jnp.dot(x_ref[...], wt_ref[...], preferred_element_type=jnp.float32)
               * xinv_ref[...] * winv_ref[...])

        @pl.when(j == 0)
        def _():
            rmax_ref[...] = jnp.full(rmax_ref.shape, -jnp.inf, rmax_ref.dtype)
            rsum_ref[...] = jnp.zeros(rsum_ref.shape, rsum_ref.dtype)

        s = s_ref[0]
        if has_col_pad:
            # interior tiles are fully valid: no iota / compare / select work
            @pl.when(j < nj - 1)
            def _():
                logits_ref[...] = cos
                _merge(rmax_ref, rsum_ref, s * cos)

            @pl.when(j == nj - 1)
            def _():
                col = j * tn + jax.lax.broadcasted_iota(jnp.int32, (tm, tn), 1)
                valid = col < n_valid_cols
                logits_ref[...] = jnp.where(valid, cos, _NEG)
                _merge(rmax_ref, rsum_ref, jnp.where(valid, s * cos, -jnp.inf))
        else:
            logits_ref[...] = cos
            _merge(rmax_ref, rsum_ref, s * cos)

    return kernel


def _make_softmax_group_kernel():
    """Scale by the NEW s, softmax, sub-cluster -> class sum via a resident bf16 matmul.

    Row max is NOT recomputed: max(s_new*cos) = (s_new/s_old)*rmax from kernel 1 is
    passed in.  The denominator is the sum of the per-class sums (group matrix
    partitions every column), so the reduction runs over c_pad instead of cs_pad.
    """

    def kernel(s_ref, rowmax_ref, logits_ref, group_ref, out_ref):
        s = s_ref[0]
        e = jnp.exp(s * logits_ref[...] - rowmax_ref[...])          # padded cols -> 0
        unnorm = jnp.dot(e.astype(jnp.bfloat16), group_ref[...],
                         preferred_element_type=jnp.float32)
        denom = jnp.sum(unnorm, axis=-1, keepdims=True)
        out_ref[...] = unnorm / denom

    return kernel


def prepare_params(W, num_classes, num_subclusters):
    """One-time layout prep (do this once per weight update, not per forward call):
    W^T in bf16 (f_pad, cs_pad), f32 inverse row norms, bf16 group matrix."""
    CS, F = W.shape
    assert CS == num_classes * num_subclusters
    f_pad = _round_up(F, 128)
    cs_pad, _, c_pad = _class_dims(num_classes, num_subclusters)

    w_p = jnp.pad(W.astype(jnp.float32), ((0, cs_pad - CS), (0, f_pad - F)))
    # F.normalize eps 1e-12 -> inverse L2 norms computed in f32 before the bf16 cast
    winv = jax.lax.rsqrt(jnp.maximum(jnp.sum(w_p * w_p, axis=1), 1e-24)).reshape(1, cs_pad)
    wt_bf = w_p.T.astype(jnp.bfloat16)                       # (f_pad, cs_pad) MXU layout

    sc = jnp.arange(cs_pad, dtype=jnp.int32)[:, None]
    cl = jnp.arange(c_pad, dtype=jnp.int32)[None, :]
    group = (sc // num_subclusters == cl).astype(jnp.bfloat16)   # exact 0/1 in bf16
    return wt_bf, winv, group


@functools.partial(jax.jit, static_argnames=("num_classes", "num_subclusters"))
def adacos_forward(x, mixup, label, wt_bf, winv, group, s,
                   num_classes, num_subclusters):
    B, F = x.shape
    C = num_classes
    S = num_subclusters
    CS = C * S
    f_pad, cs_pad = wt_bf.shape
    c_pad = group.shape[1]
    assert mixup.shape[0] == B and label.shape[0] == B, "label/input size mismatch"
    cs_chk, tn, c_chk = _class_dims(C, S)
    assert cs_chk == cs_pad and c_chk == c_pad, "prepared params do not match class config"

    tm, b_pad = _batch_dims(B, f_pad)
    ni, nj = b_pad // tm, cs_pad // tn
    has_col_pad = cs_pad != CS

    x_p = jnp.pad(x.astype(jnp.float32), ((0, b_pad - B), (0, f_pad - F)))
    xinv = jax.lax.rsqrt(jnp.maximum(jnp.sum(x_p * x_p, axis=1, keepdims=True), 1e-24))
    x_bf = x_p.astype(jnp.bfloat16)                       # bf16 MXU operand, f32 accum

    s_scalar = jnp.asarray(s, jnp.float32)
    s_old = s_scalar.reshape(1)

    cost = pl.CostEstimate(
        flops=2 * b_pad * cs_pad * f_pad,
        transcendentals=b_pad * cs_pad,
        bytes_accessed=(b_pad * f_pad * 2 + ni * f_pad * cs_pad * 2
                        + b_pad * cs_pad * 4 + (3 * b_pad + cs_pad) * 4),
    )

    logits, rmax, rsum = pl.pallas_call(
        _make_cosine_kernel(tm, tn, CS, has_col_pad),
        out_shape=(
            jax.ShapeDtypeStruct((b_pad, cs_pad), jnp.float32),   # cosine logits
            jax.ShapeDtypeStruct((b_pad, 1), jnp.float32),        # per-row max(s_old*cos)
            jax.ShapeDtypeStruct((b_pad, 1), jnp.float32),        # per-row sum exp(.-max)
        ),
        grid_spec=pltpu.PrefetchScalarGridSpec(
            num_scalar_prefetch=0,
            grid=(ni, nj),
            in_specs=[
                pl.BlockSpec(memory_space=pltpu.MemorySpace.SMEM),   # old s (scalar)
                pl.BlockSpec((tm, f_pad), lambda i, j: (i, 0)),      # x  (resident over j)
                pl.BlockSpec((f_pad, tn), lambda i, j: (0, j)),      # W^T (bf16)
                pl.BlockSpec((tm, 1), lambda i, j: (i, 0)),          # 1/||x_row||
                pl.BlockSpec((1, tn), lambda i, j: (0, j)),          # 1/||W_row||
            ],
            out_specs=[
                pl.BlockSpec((tm, tn), lambda i, j: (i, j)),
                pl.BlockSpec((tm, 1), lambda i, j: (i, 0)),
                pl.BlockSpec((tm, 1), lambda i, j: (i, 0)),
            ],
        ),
        compiler_params=pltpu.CompilerParams(
            dimension_semantics=("parallel", "arbitrary"),
            vmem_limit_bytes=64 * 1024 * 1024,
        ),
        cost_estimate=cost,
    )(s_old, x_bf, wt_bf, xinv, winv)

    # ---- adaptive-scale glue (the torch.no_grad() block): small stats-only work ----
    row_max = rmax[:B, 0]
    row_sum = rsum[:B, 0]
    max_logit = jnp.max(row_max)
    b_avg = jnp.sum(jnp.exp(row_max - max_logit) * row_sum) / B

    # theta statistic exactly as the reference: arccos of every cosine, weighted by
    # repeat_interleave(label, S, dim=1) and summed per row (supports soft labels).
    theta = jnp.arccos(jnp.clip(logits[:B, :CS], -1.0 + 1e-7, 1.0 - 1e-7))
    rep_label = jnp.repeat(label.astype(jnp.float32), S, axis=1)
    theta_row = jnp.sum(theta * rep_label, axis=1)

    # TODO(synk): torch.quantile(q=0.5, 'midpoint') over a dynamically selected
    # (nonzero-mixup) subset has no clean Pallas equivalent; masked sort + clipped
    # midpoint index (an empty selection degrades to theta_med=inf -> pi/4 instead of
    # erroring like the torch reference).
    sel = mixup != 0
    k_cnt = jnp.sum(sel.astype(jnp.int32))
    vals = jnp.sort(jnp.where(sel, theta_row, jnp.inf))
    pos = 0.5 * (k_cnt.astype(jnp.float32) - 1.0)
    lo = jnp.clip(jnp.floor(pos).astype(jnp.int32), 0, B - 1)
    hi = jnp.clip(jnp.ceil(pos).astype(jnp.int32), 0, B - 1)
    theta_med = 0.5 * (vals[lo] + vals[hi])

    s_new = (jnp.log(b_avg) + max_logit) / jnp.cos(
        jnp.minimum(jnp.asarray(math.pi / 4, jnp.float32), theta_med))

    # max(s_new * cos) per row, derived from kernel-1's stats (no in-kernel re-reduce)
    rowmax_scaled = rmax * (s_new / s_scalar)

    # ---- softmax with the new s + sub-cluster -> class sum, tiled over B ----
    # TODO(synk): for very large num_classes*num_subclusters the (tm, cs_pad) block
    # plus the resident group matrix can exceed v7x's 64 MiB VMEM; would need a CS
    # tiled (online) variant there.
    out_full = pl.pallas_call(
        _make_softmax_group_kernel(),
        out_shape=jax.ShapeDtypeStruct((b_pad, c_pad), jnp.float32),
        grid_spec=pltpu.PrefetchScalarGridSpec(
            num_scalar_prefetch=0,
            grid=(b_pad // tm,),
            in_specs=[
                pl.BlockSpec(memory_space=pltpu.MemorySpace.SMEM),   # new s (scalar)
                pl.BlockSpec((tm, 1), lambda i: (i, 0)),             # per-row max(s_new*cos)
                pl.BlockSpec((tm, cs_pad), lambda i: (i, 0)),        # cosine logits
                pl.BlockSpec((cs_pad, c_pad), lambda i: (0, 0)),     # group (bf16, resident)
            ],
            out_specs=pl.BlockSpec((tm, c_pad), lambda i: (i, 0)),
        ),
        compiler_params=pltpu.CompilerParams(
            dimension_semantics=("parallel",),
            vmem_limit_bytes=64 * 1024 * 1024,
        ),
    )(s_new.reshape(1), rowmax_scaled, logits, group)

    return out_full[:B, :C], s_new


if __name__ == "__main__":
    key = jax.random.PRNGKey(0)
    B, F, C, S = 8, 32, 4, 16          # batch, num_features, num_classes, num_subclusters
    CS = C * S
    k1, k2, k3, k4 = jax.random.split(key, 4)

    x = jax.random.normal(k1, (B, F), jnp.float32)
    label_idx = jax.random.randint(k2, (B,), 0, C)
    label = jax.nn.one_hot(label_idx, C, dtype=jnp.float32)
    mixup = (jax.random.uniform(k3, (B,)) > 0.3).astype(jnp.float32)
    mixup = mixup.at[0].set(1.0)       # at least one selected row (as torch requires)

    # nn.init.xavier_uniform_ on W of shape (C*S, F): bound = sqrt(6 / (fan_in + fan_out))
    bound = math.sqrt(6.0 / (CS + F))
    W = jax.random.uniform(k4, (CS, F), jnp.float32, -bound, bound)
    s0 = math.sqrt(2.0) * math.log(CS - 1)

    wt_bf, winv, group = prepare_params(W, C, S)   # one-time layout prep
    out, s_new = adacos_forward(x, mixup, label, wt_bf, winv, group, s0, C, S)
    out, s_new = jax.block_until_ready((out, s_new))

    assert out.shape == (B, C) and out.dtype == jnp.float32
    assert bool(jnp.all(jnp.isfinite(out))) and bool(jnp.isfinite(s_new))
    # probabilities over the real classes should sum to ~1 (padded columns carry ~0 mass)
    assert bool(jnp.all(jnp.abs(jnp.sum(out, axis=1) - 1.0) < 0.05))
    print("KERNEL_OK")
</pallas_src>

<mosaic_0001>
module attributes {stable_mosaic.version = 11 : i64} {
  func.func @kernel(%arg0: i32, %arg1: i32, %arg2: memref<1xf32, #tpu.memory_space<smem>>, %arg3: memref<8x128xbf16, #tpu.memory_space<vmem>>, %arg4: memref<128x128xbf16, #tpu.memory_space<vmem>>, %arg5: memref<8x1xf32, #tpu.memory_space<vmem>>, %arg6: memref<1x128xf32, #tpu.memory_space<vmem>>, %arg7: memref<8x128xf32, #tpu.memory_space<vmem>>, %arg8: memref<8x1xf32, #tpu.memory_space<vmem>>, %arg9: memref<8x1xf32, #tpu.memory_space<vmem>>) attributes {dimension_semantics = [#tpu.dimension_semantics<parallel>, #tpu.dimension_semantics<arbitrary>], iteration_bounds = array<i64: 1, 1>, scalar_prefetch = 0 : i64, scratch_operands = 0 : i64, tpu.core_type = #tpu.core_type<tc>, window_params = [{transform_indices = @transform_0, window_bounds = array<i64: 1>}, {transform_indices = @transform_1, window_bounds = array<i64: 8, 128>}, {transform_indices = @transform_2, window_bounds = array<i64: 128, 128>}, {transform_indices = @transform_3, window_bounds = array<i64: 8, 1>}, {transform_indices = @transform_4, window_bounds = array<i64: 1, 128>}, {transform_indices = @transform_5, window_bounds = array<i64: 8, 128>}, {transform_indices = @transform_6, window_bounds = array<i64: 8, 1>}, {transform_indices = @transform_7, window_bounds = array<i64: 8, 1>}]} {
    %c0 = arith.constant 0 : index
    %c0_0 = arith.constant 0 : index
    %0 = vector.load %arg3[%c0, %c0_0] : memref<8x128xbf16, #tpu.memory_space<vmem>>, vector<8x128xbf16>
    %c0_1 = arith.constant 0 : index
    %c0_2 = arith.constant 0 : index
    %1 = vector.load %arg4[%c0_1, %c0_2] : memref<128x128xbf16, #tpu.memory_space<vmem>>, vector<128x128xbf16>
    %cst = arith.constant dense<0.000000e+00> : vector<8x128xf32>
    %2 = tpu.matmul %0, %1, %cst {dimension_numbers = #tpu.dot_dimension_numbers<[1], [0], [0], [1], [0, 0, 1, 1], [], []>} : vector<8x128xbf16>, vector<128x128xbf16>, vector<8x128xf32> -> vector<8x128xf32>
    %c0_3 = arith.constant 0 : index
    %c0_4 = arith.constant 0 : index
    %3 = vector.load %arg5[%c0_3, %c0_4] : memref<8x1xf32, #tpu.memory_space<vmem>>, vector<8x1xf32>
    %4 = vector.broadcast %3 : vector<8x1xf32> to vector<8x128xf32>
    %5 = arith.mulf %2, %4 : vector<8x128xf32>
    %c0_5 = arith.constant 0 : index
    %c0_6 = arith.constant 0 : index
    %6 = vector.load %arg6[%c0_5, %c0_6] : memref<1x128xf32, #tpu.memory_space<vmem>>, vector<1x128xf32>
    %7 = vector.broadcast %6 : vector<1x128xf32> to vector<8x128xf32>
    %8 = arith.mulf %5, %7 : vector<8x128xf32>
    %c0_i32 = arith.constant 0 : i32
    %9 = arith.cmpi eq, %arg1, %c0_i32 : i32
    %10 = arith.extui %9 : i1 to i32
    %c0_i32_7 = arith.constant 0 : i32
    %11 = arith.cmpi ne, %10, %c0_i32_7 : i32
    scf.if %11 {
      %cst_13 = arith.constant 0xFF800000 : f32
      %19 = vector.broadcast %cst_13 : f32 to vector<8x1xf32>
      %c0_14 = arith.constant 0 : index
      %c0_15 = arith.constant 0 : index
      %20 = vector.load %arg8[%c0_14, %c0_15] : memref<8x1xf32, #tpu.memory_space<vmem>>, vector<8x1xf32>
      tpu.vector_store %arg8[%c0_14, %c0_15], %19 {strides = array<i32>} : memref<8x1xf32, #tpu.memory_space<vmem>>, vector<8x1xf32>,
      %cst_16 = arith.constant 0.000000e+00 : f32
      %21 = vector.broadcast %cst_16 : f32 to vector<8x1xf32>
      %c0_17 = arith.constant 0 : index
      %c0_18 = arith.constant 0 : index
      %22 = vector.load %arg9[%c0_17, %c0_18] : memref<8x1xf32, #tpu.memory_space<vmem>>, vector<8x1xf32>
      tpu.vector_store %arg9[%c0_17, %c0_18], %21 {strides = array<i32>} : memref<8x1xf32, #tpu.memory_space<vmem>>, vector<8x1xf32>,
    } else {
    }
    %c0_8 = arith.constant 0 : index
    %12 = memref.load %arg2[%c0_8] : memref<1xf32, #tpu.memory_space<smem>>
    %c0_i32_9 = arith.constant 0 : i32
    %13 = arith.cmpi slt, %arg1, %c0_i32_9 : i32
    %14 = arith.extui %13 : i1 to i32
    %c0_i32_10 = arith.constant 0 : i32
    %15 = arith.cmpi ne, %14, %c0_i32_10 : i32
    scf.if %15 {
      %c0_13 = arith.constant 0 : index
      %c0_14 = arith.constant 0 : index
      %19 = vector.load %arg7[%c0_13, %c0_14] : memref<8x128xf32, #tpu.memory_space<vmem>>, vector<8x128xf32>
      tpu.vector_store %arg7[%c0_13, %c0_14], %8 {strides = array<i32>} : memref<8x128xf32, #tpu.memory_space<vmem>>, vector<8x128xf32>,
      %20 = vector.broadcast %12 : f32 to vector<8x128xf32>
      %21 = arith.mulf %20, %8 : vector<8x128xf32>
      %c0_15 = arith.constant 0 : index
      %c0_16 = arith.constant 0 : index
      %22 = vector.load %arg8[%c0_15, %c0_16] : memref<8x1xf32, #tpu.memory_space<vmem>>, vector<8x1xf32>
      %cst_17 = arith.constant dense<0xFF800000> : vector<8xf32>
      %23 = vector.multi_reduction <maximumf>, %21, %cst_17 [1] : vector<8x128xf32> to vector<8xf32>
      %24 = vector.shape_cast %23 : vector<8xf32> to vector<8x1xf32>
      %25 = arith.maximumf %22, %24 : vector<8x1xf32>
      %c0_18 = arith.constant 0 : index
      %c0_19 = arith.constant 0 : index
      %26 = vector.load %arg9[%c0_18, %c0_19] : memref<8x1xf32, #tpu.memory_space<vmem>>, vector<8x1xf32>
      %27 = arith.subf %22, %25 : vector<8x1xf32>
      %28 = math.exp %27 : vector<8x1xf32>
      %29 = arith.mulf %26, %28 : vector<8x1xf32>
      %30 = vector.broadcast %25 : vector<8x1xf32> to vector<8x128xf32>
      %31 = arith.subf %21, %30 : vector<8x128xf32>
      %32 = math.exp %31 : vector<8x128xf32>
      %cst_20 = arith.constant dense<0.000000e+00> : vector<8xf32>
      %33 = vector.multi_reduction <add>, %32, %cst_20 [1] : vector<8x128xf32> to vector<8xf32>
      %34 = vector.shape_cast %33 : vector<8xf32> to vector<8x1xf32>
      %35 = arith.addf %29, %34 : vector<8x1xf32>
      %c0_21 = arith.constant 0 : index
      %c0_22 = arith.constant 0 : index
      %36 = vector.load %arg9[%c0_21, %c0_22] : memref<8x1xf32, #tpu.memory_space<vmem>>, vector<8x1xf32>
      tpu.vector_store %arg9[%c0_21, %c0_22], %35 {strides = array<i32>} : memref<8x1xf32, #tpu.memory_space<vmem>>, vector<8x1xf32>,
      %c0_23 = arith.constant 0 : index
      %c0_24 = arith.constant 0 : index
      %37 = vector.load %arg8[%c0_23, %c0_24] : memref<8x1xf32, #tpu.memory_space<vmem>>, vector<8x1xf32>
      tpu.vector_store %arg8[%c0_23, %c0_24], %25 {strides = array<i32>} : memref<8x1xf32, #tpu.memory_space<vmem>>, vector<8x1xf32>,
    } else {
    }
    %c0_i32_11 = arith.constant 0 : i32
    %16 = arith.cmpi eq, %arg1, %c0_i32_11 : i32
    %17 = arith.extui %16 : i1 to i32
    %c0_i32_12 = arith.constant 0 : i32
    %18 = arith.cmpi ne, %17, %c0_i32_12 : i32
    scf.if %18 {
      %c128_i32 = arith.constant 128 : i32
      %19 = arith.muli %arg1, %c128_i32 : i32
      %20 = tpu.iota {dimensions = array<i32: 1>} : vector<8x128xi32>
      %21 = vector.broadcast %19 : i32 to vector<8x128xi32>
      %22 = arith.addi %21, %20 : vector<8x128xi32>
      %c64_i32 = arith.constant 64 : i32
      %23 = vector.broadcast %c64_i32 : i32 to vector<8x128xi32>
      %24 = arith.cmpi slt, %22, %23 : vector<8x128xi32>
      %cst_13 = arith.constant -1.000000e+30 : f32
      %25 = vector.broadcast %cst_13 : f32 to vector<8x128xf32>
      %26 = arith.select %24, %8, %25 : vector<8x128xi1>, vector<8x128xf32>
      %c0_14 = arith.constant 0 : index
      %c0_15 = arith.constant 0 : index
      %27 = vector.load %arg7[%c0_14, %c0_15] : memref<8x128xf32, #tpu.memory_space<vmem>>, vector<8x128xf32>
      tpu.vector_store %arg7[%c0_14, %c0_15], %26 {strides = array<i32>} : memref<8x128xf32, #tpu.memory_space<vmem>>, vector<8x128xf32>,
      %28 = vector.broadcast %12 : f32 to vector<8x128xf32>
      %29 = arith.mulf %28, %8 : vector<8x128xf32>
      %cst_16 = arith.constant 0xFF800000 : f32
      %30 = vector.broadcast %cst_16 : f32 to vector<8x128xf32>
      %31 = arith.select %24, %29, %30 : vector<8x128xi1>, vector<8x128xf32>
      %c0_17 = arith.constant 0 : index
      %c0_18 = arith.constant 0 : index
      %32 = vector.load %arg8[%c0_17, %c0_18] : memref<8x1xf32, #tpu.memory_space<vmem>>, vector<8x1xf32>
      %cst_19 = arith.constant dense<0xFF800000> : vector<8xf32>
      %33 = vector.multi_reduction <maximumf>, %31, %cst_19 [1] : vector<8x128xf32> to vector<8xf32>
      %34 = vector.shape_cast %33 : vector<8xf32> to vector<8x1xf32>
      %35 = arith.maximumf %32, %34 : vector<8x1xf32>
      %c0_20 = arith.constant 0 : index
      %c0_21 = arith.constant 0 : index
      %36 = vector.load %arg9[%c0_20, %c0_21] : memref<8x1xf32, #tpu.memory_space<vmem>>, vector<8x1xf32>
      %37 = arith.subf %32, %35 : vector<8x1xf32>
      %38 = math.exp %37 : vector<8x1xf32>
      %39 = arith.mulf %36, %38 : vector<8x1xf32>
      %40 = vector.broadcast %35 : vector<8x1xf32> to vector<8x128xf32>
      %41 = arith.subf %31, %40 : vector<8x128xf32>
      %42 = math.exp %41 : vector<8x128xf32>
      %cst_22 = arith.constant dense<0.000000e+00> : vector<8xf32>
      %43 = vector.multi_reduction <add>, %42, %cst_22 [1] : vector<8x128xf32> to vector<8xf32>
      %44 = vector.shape_cast %43 : vector<8xf32> to vector<8x1xf32>
      %45 = arith.addf %39, %44 : vector<8x1xf32>
      %c0_23 = arith.constant 0 : index
      %c0_24 = arith.constant 0 : index
      %46 = vector.load %arg9[%c0_23, %c0_24] : memref<8x1xf32, #tpu.memory_space<vmem>>, vector<8x1xf32>
      tpu.vector_store %arg9[%c0_23, %c0_24], %45 {strides = array<i32>} : memref<8x1xf32, #tpu.memory_space<vmem>>, vector<8x1xf32>,
      %c0_25 = arith.constant 0 : index
      %c0_26 = arith.constant 0 : index
      %47 = vector.load %arg8[%c0_25, %c0_26] : memref<8x1xf32, #tpu.memory_space<vmem>>, vector<8x1xf32>
      tpu.vector_store %arg8[%c0_25, %c0_26], %35 {strides = array<i32>} : memref<8x1xf32, #tpu.memory_space<vmem>>, vector<8x1xf32>,
    } else {
    }
    return
  }
  func.func @transform_0(%arg0: i32, %arg1: i32) -> i32 {
    %c0_i32 = arith.constant 0 : i32
    %c0_i32_0 = arith.constant 0 : i32
    return %c0_i32 : i32
  }
  func.func @transform_1(%arg0: i32, %arg1: i32) -> (i32, i32) {
    %c0_i32 = arith.constant 0 : i32
    %c0_i32_0 = arith.constant 0 : i32
    return %arg0, %c0_i32 : i32, i32
  }
  func.func @transform_2(%arg0: i32, %arg1: i32) -> (i32, i32) {
    %c0_i32 = arith.constant 0 : i32
    %c0_i32_0 = arith.constant 0 : i32
    return %c0_i32, %arg1 : i32, i32
  }
  func.func @transform_3(%arg0: i32, %arg1: i32) -> (i32, i32) {
    %c0_i32 = arith.constant 0 : i32
    %c0_i32_0 = arith.constant 0 : i32
    return %arg0, %c0_i32 : i32, i32
  }
  func.func @transform_4(%arg0: i32, %arg1: i32) -> (i32, i32) {
    %c0_i32 = arith.constant 0 : i32
    %c0_i32_0 = arith.constant 0 : i32
    return %c0_i32, %arg1 : i32, i32
  }
  func.func @transform_5(%arg0: i32, %arg1: i32) -> (i32, i32) {
    %c0_i32 = arith.constant 0 : i32
    return %arg0, %arg1 : i32, i32
  }
  func.func @transform_6(%arg0: i32, %arg1: i32) -> (i32, i32) {
    %c0_i32 = arith.constant 0 : i32
    %c0_i32_0 = arith.constant 0 : i32
    return %arg0, %c0_i32 : i32, i32
  }
  func.func @transform_7(%arg0: i32, %arg1: i32) -> (i32, i32) {
    %c0_i32 = arith.constant 0 : i32
    %c0_i32_0 = arith.constant 0 : i32
    return %arg0, %c0_i32 : i32, i32
  }
}

module attributes {stable_mosaic.version = 11 : i64} {
  func.func @kernel(%arg0: i32, %arg1: memref<1xf32, #tpu.memory_space<smem>>, %arg2: memref<8x1xf32, #tpu.memory_space<vmem>>, %arg3: memref<8x128xf32, #tpu.memory_space<vmem>>, %arg4: memref<128x8xbf16, #tpu.memory_space<vmem>>, %arg5: memref<8x8xf32, #tpu.memory_space<vmem>>) attributes {dimension_semantics = [#tpu.dimension_semantics<parallel>], iteration_bounds = array<i64: 1>, scalar_prefetch = 0 : i64, scratch_operands = 0 : i64, tpu.core_type = #tpu.core_type<tc>, window_params = [{transform_indices = @transform_0, window_bounds = array<i64: 1>}, {transform_indices = @transform_1, window_bounds = array<i64: 8, 1>}, {transform_indices = @transform_2, window_bounds = array<i64: 8, 128>}, {pipeline_mode = #tpu.pipeline_mode<synchronous>, transform_indices = @transform_3, window_bounds = array<i64: 128, 8>}, {transform_indices = @transform_4, window_bounds = array<i64: 8, 8>}]} {
    %c0 = arith.constant 0 : index
    %0 = memref.load %arg1[%c0] : memref<1xf32, #tpu.memory_space<smem>>
    %c0_0 = arith.constant 0 : index
    %c0_1 = arith.constant 0 : index
    %1 = vector.load %arg3[%c0_0, %c0_1] : memref<8x128xf32, #tpu.memory_space<vmem>>, vector<8x128xf32>
    %2 = vector.broadcast %0 : f32 to vector<8x128xf32>
    %3 = arith.mulf %2, %1 : vector<8x128xf32>
    %c0_2 = arith.constant 0 : index
    %c0_3 = arith.constant 0 : index
    %4 = vector.load %arg2[%c0_2, %c0_3] : memref<8x1xf32, #tpu.memory_space<vmem>>, vector<8x1xf32>
    %5 = vector.broadcast %4 : vector<8x1xf32> to vector<8x128xf32>
    %6 = arith.subf %3, %5 : vector<8x128xf32>
    %7 = math.exp %6 : vector<8x128xf32>
    %8 = arith.truncf %7 : vector<8x128xf32> to vector<8x128xbf16>
    %c0_4 = arith.constant 0 : index
    %c0_5 = arith.constant 0 : index
    %9 = vector.load %arg4[%c0_4, %c0_5] : memref<128x8xbf16, #tpu.memory_space<vmem>>, vector<128x8xbf16>
    %cst = arith.constant dense<0.000000e+00> : vector<8x8xf32>
    %10 = tpu.matmul %8, %9, %cst {dimension_numbers = #tpu.dot_dimension_numbers<[1], [0], [0], [1], [0, 0, 1, 1], [], []>} : vector<8x128xbf16>, vector<128x8xbf16>, vector<8x8xf32> -> vector<8x8xf32>
    %cst_6 = arith.constant dense<0.000000e+00> : vector<8xf32>
    %11 = vector.multi_reduction <add>, %10, %cst_6 [1] : vector<8x8xf32> to vector<8xf32>
    %12 = vector.shape_cast %11 : vector<8xf32> to vector<8x1xf32>
    %13 = vector.broadcast %12 : vector<8x1xf32> to vector<8x8xf32>
    %14 = arith.divf %10, %13 : vector<8x8xf32>
    %c0_7 = arith.constant 0 : index
    %c0_8 = arith.constant 0 : index
    %15 = vector.load %arg5[%c0_7, %c0_8] : memref<8x8xf32, #tpu.memory_space<vmem>>, vector<8x8xf32>
    tpu.vector_store %arg5[%c0_7, %c0_8], %14 {strides = array<i32>} : memref<8x8xf32, #tpu.memory_space<vmem>>, vector<8x8xf32>,
    return
  }
  func.func @transform_0(%arg0: i32) -> i32 {
    %c0_i32 = arith.constant 0 : i32
    %c0_i32_0 = arith.constant 0 : i32
    return %c0_i32 : i32
  }
  func.func @transform_1(%arg0: i32) -> (i32, i32) {
    %c0_i32 = arith.constant 0 : i32
    %c0_i32_0 = arith.constant 0 : i32
    return %arg0, %c0_i32 : i32, i32
  }
  func.func @transform_2(%arg0: i32) -> (i32, i32) {
    %c0_i32 = arith.constant 0 : i32
    %c0_i32_0 = arith.constant 0 : i32
    return %arg0, %c0_i32 : i32, i32
  }
  func.func @transform_3(%arg0: i32) -> (i32, i32) {
    %c0_i32 = arith.constant 0 : i32
    %c0_i32_0 = arith.constant 0 : i32
    %c0_i32_1 = arith.constant 0 : i32
    return %c0_i32, %c0_i32_0 : i32, i32
  }
  func.func @transform_4(%arg0: i32) -> (i32, i32) {
    %c0_i32 = arith.constant 0 : i32
    %c0_i32_0 = arith.constant 0 : i32
    return %arg0, %c0_i32 : i32, i32
  }
}

</mosaic_0001>

<llo_original>
// kernel: adacos_forward.2
$region0: #{adacos_forward.2}
  #allocation0 [shape = 'u32[]', space=smem, size = 0x4, offset = 0x4, fixed_abs, tag = 'smem constant byte address 0x4 - core index']
  #allocation1 [shape = 'u32[72,128]{1,0:T(1,128)}', space=vmem, size = 0x9000, scoped, tag = 'internal scratch']
  #allocation2 [shape = 'f32[1]{0:T(128)S(6)}', space=smem, size = 0x200, scoped, tag = 'scoped memory for adacos_forward.2']
  %s0 = inlined_call_operand.<no memory space> [shape: f32[1], index: 0, kind: input, shape index: {}]
  %s1 = inlined_call_operand.vmem [shape: bf16[8,128], index: 1, kind: input, shape index: {}]
  %s2 = inlined_call_operand.vmem [shape: bf16[128,128], index: 2, kind: input, shape index: {}]
  %s3 = inlined_call_operand.vmem [shape: f32[8,1], index: 3, kind: input, shape index: {}]
  %s4 = inlined_call_operand.vmem [shape: f32[1,128], index: 4, kind: input, shape index: {}]
  %s5 = inlined_call_operand.vmem [shape: f32[8,128], index: 5, kind: output, shape index: {0}]
  %s6 = inlined_call_operand.vmem [shape: f32[8,1], index: 6, kind: output, shape index: {1}]
  %s7 = inlined_call_operand.vmem [shape: f32[8,1], index: 7, kind: output, shape index: {2}]
  %8 = xla_tuple %s5, %s6, %s7
  %s9 = sld [smem:[#allocation0]]
  $region58: #{adacos_forward.2} parent=0
    _
  %s11 = ssub.s32 1, %s9
  %s12 = scalar_select 0, %s11, %s9
  %13 = sst [smem:[#allocation2]] %s0
  // Predicated region
  $region2: #{adacos_forward.2} parent=0 // pred_check
    _
  $region3: #{adacos_forward.2} parent=0 // pred_check_branch
    %15 = sbr.rel (0) target = $region5
  $region4: #{adacos_forward.2} parent=0 // pred_region
    _
  $region5: #{adacos_forward.2} parent=0 // pred_fallthru
    _
  // Predicated region
  $region6: #{adacos_forward.2} parent=0 // pred_check
    _
  $region7: #{adacos_forward.2} parent=0 // pred_check_branch
    %17 = sbr.rel (0) target = $region9
  $region8: #{adacos_forward.2} parent=0 // pred_region
    _
  $region9: #{adacos_forward.2} parent=0 // pred_fallthru
    _
  // Predicated region
  $region10: #{adacos_forward.2} parent=0 // pred_check
    _
  $region11: #{adacos_forward.2} parent=0 // pred_check_branch
    %19 = sbr.rel (0) target = $region13
  $region12: #{adacos_forward.2} parent=0 // pred_region
    _
  $region13: #{adacos_forward.2} parent=0 // pred_fallthru
    _
  // Predicated region
  $region14: #{adacos_forward.2} parent=0 // pred_check
    _
  $region15: #{adacos_forward.2} parent=0 // pred_check_branch
    %21 = sbr.rel (0) target = $region17
  $region16: #{adacos_forward.2} parent=0 // pred_region
    _
  $region17: #{adacos_forward.2} parent=0 // pred_fallthru
    _
  // Predicated region
  $region18: #{adacos_forward.2} parent=0 // pred_check
    _
  $region19: #{adacos_forward.2} parent=0 // pred_check_branch
    %23 = sbr.rel (0) target = $region21
  $region20: #{adacos_forward.2} parent=0 // pred_region
    _
  $region21: #{adacos_forward.2} parent=0 // pred_fallthru
    _
  %v24 = vld [vmem:[%s1] sm:$0xf]
  %v25 = vld [vmem:[%s2] sm:$0xf]
  %v26 = vld [vmem:[%s2 + $0x4] sm:$0xf]
  %v27 = vld [vmem:[%s2 + $0x8] sm:$0xf]
  %v28 = vld [vmem:[%s2 + $0xc] sm:$0xf]
  %v29 = vld [vmem:[%s2 + $0x10] sm:$0xf]
  %v30 = vld [vmem:[%s2 + $0x14] sm:$0xf]
  %v31 = vld [vmem:[%s2 + $0x18] sm:$0xf]
  %v32 = vld [vmem:[%s2 + $0x1c] sm:$0xf]
  %v33 = vld [vmem:[%s2 + $0x20] sm:$0xf]
  %v34 = vld [vmem:[%s2 + $0x24] sm:$0xf]
  %v35 = vld [vmem:[%s2 + $0x28] sm:$0xf]
  %v36 = vld [vmem:[%s2 + $0x2c] sm:$0xf]
  %v37 = vld [vmem:[%s2 + $0x30] sm:$0xf]
  %v38 = vld [vmem:[%s2 + $0x34] sm:$0xf]
  %v39 = vld [vmem:[%s2 + $0x38] sm:$0xf]
  %v40 = vld [vmem:[%s2 + $0x3c] sm:$0xf]
  %v57 = vunpack.c.l.b16 %v25
  %v58 = vunpack.c.l.b16 %v26
  %v59 = vunpack.c.l.b16 %v27
  %v60 = vunpack.c.l.b16 %v28
  %v61 = vunpack.c.l.b16 %v29
  %v62 = vunpack.c.l.b16 %v30
  %v63 = vunpack.c.l.b16 %v31
  %v64 = vunpack.c.l.b16 %v32
  %v65 = vunpack.c.l.b16 %v33
  %v66 = vunpack.c.l.b16 %v34
  %v67 = vunpack.c.l.b16 %v35
  %v68 = vunpack.c.l.b16 %v36
  %v69 = vunpack.c.l.b16 %v37
  %v70 = vunpack.c.l.b16 %v38
  %v71 = vunpack.c.l.b16 %v39
  %v72 = vunpack.c.l.b16 %v40
  %v73 = vpack.c.b16 %v58, %v57
  %v74 = vpack.c.b16 %v60, %v59
  %v75 = vpack.c.b16 %v62, %v61
  %v76 = vpack.c.b16 %v64, %v63
  %v77 = vpack.c.b16 %v66, %v65
  %v78 = vpack.c.b16 %v68, %v67
  %v79 = vpack.c.b16 %v70, %v69
  %v80 = vpack.c.b16 %v72, %v71
  %89 = vmatpush.bf16.msra.mxu0 %v80
  %90 = vmatpush.bf16.msra.mxu0 %v79
  %91 = vmatpush.bf16.msra.mxu0 %v78
  %92 = vmatpush.bf16.msra.mxu0 %v77
  %93 = vmatpush.bf16.msra.mxu0 %v76
  %94 = vmatpush.bf16.msra.mxu0 %v75
  %95 = vmatpush.bf16.msra.mxu0 %v74
  %96 = vmatpush.bf16.msra.mxu0 %v73
  %97 = vmatmul.bf16.gmra.mxu0 %v24
  %v98 = vpop.f32.mrf.mxu0
  %v99 = vadd.f32 0.0, %v98
  %v100 = vpop.f32.mrf.mxu0
  %101 = vdwg.mxu0
  %v102 = vld [vmem:[%s3] sm:$0xff]
  %104 = vset.pattern.permute.xlu0 0
  %105 = vperm.xlu0 %104, %v102
  %v106 = vpop.permute.xlu0 %105
  %v108 = vmul.f32 %v99, %v106
  %v109 = vld [vmem:[%s4] sm:$0x1]
  %v111 = vperm.slane %v109, 0
  %v113 = vmul.f32 %v108, %v111
  %p114 = scmp.eq.s32.totalorder 0, 0
  // Predicated region
  $region22: #{adacos_forward.2} parent=0 // pred_check
    %p115 = pneg %p114
  $region23: #{adacos_forward.2} parent=0 // pred_check_branch
    %117 = sbr.rel (%p115) target = $region25
  $region24: #{adacos_forward.2} parent=0 // pred_region
    %vm118 = vcmask 7168
    %119 = vst.msk [vmem:[%s6] sm:$0xff] %vm118, -inf
    %120 = vst.msk [vmem:[%s7] sm:$0xff] %vm118, 0.0
  $region25: #{adacos_forward.2} parent=0 // pred_fallthru
    _
  %s121 = sld [smem:[#allocation2]]
  %p122 = scmp.lt.s32.totalorder 0, 0
  // Predicated region
  $region26: #{adacos_forward.2} parent=0 // pred_check
    %p123 = pneg %p122
  $region27: #{adacos_forward.2} parent=0 // pred_check_branch
    %125 = sbr.rel (%p123) target = $region29
  $region28: #{adacos_forward.2} parent=0 // pred_region
    %126 = vst [vmem:[%s5] sm:$0xff] %v113
    %v127 = vstv %s121
    %v128 = vmul.f32 %v127, %v113
    %v129 = vld [vmem:[%s6] sm:$0xff]
    %130 = vmax.xlane.f32.xlu0 %v128
    %v131 = vpop.xlane.xlu0 %130
    %v132 = vmax.f32 %v129, %v131
    %v133 = vld [vmem:[%s7] sm:$0xff]
    %v134 = vsub.f32 %v129, %v132
    %v135 = vmul.f32 %v134, 1.442695
    %v136 = vpow.pop %v135
    %v137 = vmul.f32 %v133, %v136
    %139 = vset.pattern.permute.xlu0 0
    %140 = vperm.xlu0 %139, %v132
    %v141 = vpop.permute.xlu0 %140
    %v143 = vsub.f32 %v128, %v141
    %v144 = vmul.f32 %v143, 1.442695
    %v145 = vpow.pop %v144
    %146 = vadd.xlane.f32.xlu0 %v145
    %v147 = vpop.xlane.xlu0 %146
    %v148 = vadd.f32 %v137, %v147
    %vm149 = vcmask 7168
    %150 = vst.msk [vmem:[%s7] sm:$0xff] %vm149, %v148
    %151 = vst.msk [vmem:[%s6] sm:$0xff] %vm149, %v132
  $region29: #{adacos_forward.2} parent=0 // pred_fallthru
    _
  // Predicated region
  $region30: #{adacos_forward.2} parent=0 // pred_check
    %p152 = pneg %p114
  $region31: #{adacos_forward.2} parent=0 // pred_check_branch
    %154 = sbr.rel (%p152) target = $region33
  $region32: #{adacos_forward.2} parent=0 // pred_region
    %s155 = smul.u32 0, 128
    %v156 = vlaneseq
    %v157 = vand.u32 %v156, 127
    %v158 = vstv %s155
    %v159 = vadd.s32 %v158, %v157
    %vm160 = vcmp.lt.s32.totalorder %v159, 64
    %v161 = vsel %vm160, %v113, -1e+30
    %162 = vst [vmem:[%s5] sm:$0xff] %v161
    %v163 = vstv %s121
    %v164 = vmul.f32 %v163, %v113
    %v165 = vsel %vm160, %v164, -inf
    %v166 = vld [vmem:[%s6] sm:$0xff]
    %167 = vmax.xlane.f32.xlu0 %v165
    %v168 = vpop.xlane.xlu0 %167
    %v169 = vmax.f32 %v166, %v168
    %v170 = vld [vmem:[%s7] sm:$0xff]
    %v171 = vsub.f32 %v166, %v169
    %v172 = vmul.f32 %v171, 1.442695
    %v173 = vpow.pop %v172
    %v174 = vmul.f32 %v170, %v173
    %176 = vset.pattern.permute.xlu0 0
    %177 = vperm.xlu0 %176, %v169
    %v178 = vpop.permute.xlu0 %177
    %v180 = vsub.f32 %v165, %v178
    %v181 = vmul.f32 %v180, 1.442695
    %v182 = vpow.pop %v181
    %183 = vadd.xlane.f32.xlu0 %v182
    %v184 = vpop.xlane.xlu0 %183
    %v185 = vadd.f32 %v174, %v184
    %vm186 = vcmask 7168
    %187 = vst.msk [vmem:[%s7] sm:$0xff] %vm186, %v185
    %188 = vst.msk [vmem:[%s6] sm:$0xff] %vm186, %v169
  $region33: #{adacos_forward.2} parent=0 // pred_fallthru
    _
  // Predicated region
  $region34: #{adacos_forward.2} parent=0 // pred_check
    _
  $region35: #{adacos_forward.2} parent=0 // pred_check_branch
    %190 = sbr.rel (0) target = $region37
  $region36: #{adacos_forward.2} parent=0 // pred_region
    _
  $region37: #{adacos_forward.2} parent=0 // pred_fallthru
    _
  // Predicated region
  $region38: #{adacos_forward.2} parent=0 // pred_check
    _
  $region39: #{adacos_forward.2} parent=0 // pred_check_branch
    %192 = sbr.rel (0) target = $region41
  $region40: #{adacos_forward.2} parent=0 // pred_region
    _
  $region41: #{adacos_forward.2} parent=0 // pred_fallthru
    _
  // Predicated region
  $region42: #{adacos_forward.2} parent=0 // pred_check
    _
  $region43: #{adacos_forward.2} parent=0 // pred_check_branch
    %194 = sbr.rel (0) target = $region45
  $region44: #{adacos_forward.2} parent=0 // pred_region
    _
  $region45: #{adacos_forward.2} parent=0 // pred_fallthru
    _
  // Predicated region
  $region46: #{adacos_forward.2} parent=0 // pred_check
    _
  $region47: #{adacos_forward.2} parent=0 // pred_check_branch
    %196 = sbr.rel (0) target = $region49
  $region48: #{adacos_forward.2} parent=0 // pred_region
    _
  $region49: #{adacos_forward.2} parent=0 // pred_fallthru
    _
  // Predicated region
  $region50: #{adacos_forward.2} parent=0 // pred_check
    _
  $region51: #{adacos_forward.2} parent=0 // pred_check_branch
    %198 = sbr.rel (0) target = $region53
  $region52: #{adacos_forward.2} parent=0 // pred_region
    _
  $region53: #{adacos_forward.2} parent=0 // pred_fallthru
    _
  // Predicated region
  $region54: #{adacos_forward.2} parent=0 // pred_check
    _
  $region55: #{adacos_forward.2} parent=0 // pred_check_branch
    %200 = sbr.rel (0) target = $region57
  $region56: #{adacos_forward.2} parent=0 // pred_region
    _
  $region57: #{adacos_forward.2} parent=0 // pred_fallthru
    _

// kernel: adacos_forward.3
$region0: #{adacos_forward.3}
  #allocation0 [shape = 'u32[]', space=smem, size = 0x4, offset = 0x4, fixed_abs, tag = 'smem constant byte address 0x4 - core index']
  #allocation1 [shape = 'u32[72,128]{1,0:T(1,128)}', space=vmem, size = 0x9000, scoped, tag = 'internal scratch']
  #allocation2 [shape = 'f32[1]{0:T(128)S(6)}', space=smem, size = 0x200, scoped, tag = 'scoped memory for adacos_forward.3']
  %s0 = inlined_call_operand.<no memory space> [shape: f32[1], index: 0, kind: input, shape index: {}]
  %s1 = inlined_call_operand.vmem [shape: f32[8,1], index: 1, kind: input, shape index: {}]
  %s2 = inlined_call_operand.vmem [shape: f32[8,128], index: 2, kind: input, shape index: {}]
  %s3 = inlined_call_operand.vmem [shape: bf16[128,8], index: 3, kind: input, shape index: {}]
  %s4 = inlined_call_operand.vmem [shape: f32[8,8], index: 4, kind: output, shape index: {}]
  %s5 = sld [smem:[#allocation0]]
  $region26: #{adacos_forward.3} parent=0
    _
  %s7 = ssub.s32 1, %s5
  %s8 = scalar_select 0, %s7, %s5
  %9 = sst [smem:[#allocation2]] %s0
  // Predicated region
  $region2: #{adacos_forward.3} parent=0 // pred_check
    _
  $region3: #{adacos_forward.3} parent=0 // pred_check_branch
    %11 = sbr.rel (0) target = $region5
  $region4: #{adacos_forward.3} parent=0 // pred_region
    _
  $region5: #{adacos_forward.3} parent=0 // pred_fallthru
    _
  // Predicated region
  $region6: #{adacos_forward.3} parent=0 // pred_check
    _
  $region7: #{adacos_forward.3} parent=0 // pred_check_branch
    %13 = sbr.rel (0) target = $region9
  $region8: #{adacos_forward.3} parent=0 // pred_region
    _
  $region9: #{adacos_forward.3} parent=0 // pred_fallthru
    _
  // Predicated region
  $region10: #{adacos_forward.3} parent=0 // pred_check
    _
  $region11: #{adacos_forward.3} parent=0 // pred_check_branch
    %15 = sbr.rel (0) target = $region13
  $region12: #{adacos_forward.3} parent=0 // pred_region
    _
  $region13: #{adacos_forward.3} parent=0 // pred_fallthru
    _
  // Predicated region
  $region14: #{adacos_forward.3} parent=0 // pred_check
    _
  $region15: #{adacos_forward.3} parent=0 // pred_check_branch
    %17 = sbr.rel (0) target = $region17
  $region16: #{adacos_forward.3} parent=0 // pred_region
    _
  $region17: #{adacos_forward.3} parent=0 // pred_fallthru
    _
  %s18 = sld [smem:[#allocation2]]
  %v19 = vld [vmem:[%s2] sm:$0xff]
  %v20 = vstv %s18
  %v21 = vmul.f32 %v20, %v19
  %v22 = vld [vmem:[%s1] sm:$0xff]
  %24 = vset.pattern.permute.xlu0 0
  %25 = vperm.xlu0 %24, %v22
  %v26 = vpop.permute.xlu0 %25
  %v28 = vsub.f32 %v21, %v26
  %v29 = vmul.f32 %v28, 1.442695
  %v30 = vpow.pop %v29
  %v31 = vpack.c.bf16 %v30, %v30
  %v32 = vld [vmem:[%s3] sm:$0xf]
  %v33 = vld [vmem:[%s3 + $0x4] sm:$0xf]
  %v34 = vld [vmem:[%s3 + $0x8] sm:$0xf]
  %v35 = vld [vmem:[%s3 + $0xc] sm:$0xf]
  %v36 = vld [vmem:[%s3 + $0x10] sm:$0xf]
  %v37 = vld [vmem:[%s3 + $0x14] sm:$0xf]
  %v38 = vld [vmem:[%s3 + $0x18] sm:$0xf]
  %v39 = vld [vmem:[%s3 + $0x1c] sm:$0xf]
  %v40 = vld [vmem:[%s3 + $0x20] sm:$0xf]
  %v41 = vld [vmem:[%s3 + $0x24] sm:$0xf]
  %v42 = vld [vmem:[%s3 + $0x28] sm:$0xf]
  %v43 = vld [vmem:[%s3 + $0x2c] sm:$0xf]
  %v44 = vld [vmem:[%s3 + $0x30] sm:$0xf]
  %v45 = vld [vmem:[%s3 + $0x34] sm:$0xf]
  %v46 = vld [vmem:[%s3 + $0x38] sm:$0xf]
  %v47 = vld [vmem:[%s3 + $0x3c] sm:$0xf]
  %v64 = vunpack.c.l.b16 %v32
  %v65 = vunpack.c.l.b16 %v33
  %v66 = vunpack.c.l.b16 %v34
  %v67 = vunpack.c.l.b16 %v35
  %v68 = vunpack.c.l.b16 %v36
  %v69 = vunpack.c.l.b16 %v37
  %v70 = vunpack.c.l.b16 %v38
  %v71 = vunpack.c.l.b16 %v39
  %v72 = vunpack.c.l.b16 %v40
  %v73 = vunpack.c.l.b16 %v41
  %v74 = vunpack.c.l.b16 %v42
  %v75 = vunpack.c.l.b16 %v43
  %v76 = vunpack.c.l.b16 %v44
  %v77 = vunpack.c.l.b16 %v45
  %v78 = vunpack.c.l.b16 %v46
  %v79 = vunpack.c.l.b16 %v47
  %v80 = vpack.c.b16 %v65, %v64
  %v81 = vpack.c.b16 %v67, %v66
  %v82 = vpack.c.b16 %v69, %v68
  %v83 = vpack.c.b16 %v71, %v70
  %v84 = vpack.c.b16 %v73, %v72
  %v85 = vpack.c.b16 %v75, %v74
  %v86 = vpack.c.b16 %v77, %v76
  %v87 = vpack.c.b16 %v79, %v78
  %96 = vmatpush.bf16.msra.mxu0 %v87
  %97 = vmatpush.bf16.msra.mxu0 %v86
  %98 = vmatpush.bf16.msra.mxu0 %v85
  %99 = vmatpush.bf16.msra.mxu0 %v84
  %100 = vmatpush.bf16.msra.mxu0 %v83
  %101 = vmatpush.bf16.msra.mxu0 %v82
  %102 = vmatpush.bf16.msra.mxu0 %v81
  %103 = vmatpush.bf16.msra.mxu0 %v80
  %104 = vmatmul.bf16.gmra.mxu0 %v31
  %v105 = vpop.f32.mrf.mxu0
  %v106 = vadd.f32 0.0, %v105
  %v107 = vpop.f32.mrf.mxu0
  %108 = vdwg.mxu0
  %vm109 = vcmask 64512
  %v110 = vsel %vm109, %v106, 0.0
  %111 = vadd.xlane.f32.xlu0 %v110
  %v112 = vpop.xlane.xlu0 %111
  %v113 = vrcp.pop %v112
  %v114 = vmul.f32 %v112, %v113
  %v115 = vsub.f32 1.0, %v114
  %v116 = vmul.f32 %v113, %v115
  %v117 = vadd.f32 %v113, %v116
  %vm118 = vweird.f32 %v112
  %vm119 = vweird.f32 %v113
  %vm120 = vmor %vm118, %vm119
  %v121 = vsel %vm120, %v113, %v117
  %v122 = vand.u32 2147483647, %v112
  %vm123 = vcmp.eq.f32.partialorder %v122, 8.507059e+37
  %v124 = vand.u32 %v112, 2147483648
  %v125 = vor.u32 1.1754944e-38, %v124
  %v126 = vsel %vm123, %v125, %v121
  %v127 = vmul.f32 %v106, %v126
  %128 = vst.msk [vmem:[%s4] sm:$0xff] %vm109, %v127
  // Predicated region
  $region18: #{adacos_forward.3} parent=0 // pred_check
    _
  $region19: #{adacos_forward.3} parent=0 // pred_check_branch
    %130 = sbr.rel (0) target = $region21
  $region20: #{adacos_forward.3} parent=0 // pred_region
    _
  $region21: #{adacos_forward.3} parent=0 // pred_fallthru
    _
  // Predicated region
  $region22: #{adacos_forward.3} parent=0 // pred_check
    _
  $region23: #{adacos_forward.3} parent=0 // pred_check_branch
    %132 = sbr.rel (0) target = $region25
  $region24: #{adacos_forward.3} parent=0 // pred_region
    _
  $region25: #{adacos_forward.3} parent=0 // pred_fallthru
    _

</llo_original>
